<compile_context>
chip_gen: v7x
topology: tpu7x:2x2x1
jax: 0.10.0
libtpu: 0.0.40
codegen_flags: <defaults>
</compile_context>

<pallas_src>
from functools import partial

import jax
import jax.numpy as jnp
from jax import lax
from jax.experimental import pallas as pl
from jax.experimental.pallas import tpu as pltpu

_MIB = 1024 * 1024


def _round_up(v, m):
    return ((v + m - 1) // m) * m


def _vmem_plan():
    """(padded x-block byte budget, vmem_limit_bytes) for this chip generation."""
    try:
        cap = int(pltpu.get_tpu_info().vmem_capacity_bytes)
    except Exception:  # query unavailable -> assume the smallest VMEM (v7x, 64 MiB)
        cap = 64 * _MIB
    if cap <= 64 * _MIB:
        # v7x: 2 x 8 MiB x buffers + output/weight buffers stay well under ~48 MiB,
        # leaving compiler-scratch headroom below the 56 MiB limit.
        return 8 * _MIB, 56 * _MIB
    # v5e / v6e (128 MiB): bigger blocks -> fewer grid steps, better HBM efficiency.
    return 20 * _MIB, 100 * _MIB


def _choose_tiles(B, N, D_feat, itemsize, x_block_budget):
    """Pick (TB, TN): TB*TN rows feed the MXU M axis while one x block stays within
    `x_block_budget` of *padded* VMEM bytes (lane dim -> 128, instance dim -> sublane)."""
    sublane = 8 * max(1, 4 // max(1, itemsize))       # 8 rows/tile f32, 16 bf16
    row_bytes = _round_up(D_feat, 128) * itemsize     # one padded instance row
    budget_rows = max(sublane, x_block_budget // row_bytes)
    budget_rows = (budget_rows // sublane) * sublane  # keep sublane alignment

    n_pad = _round_up(N, sublane)                     # TN sublane-aligned; tail masked
    if n_pad <= budget_rows:
        tn = n_pad                                    # whole bag per tile
        tb = max(1, min(B, budget_rows // tn))
        if B >= 16:
            # v7x has two TensorCores: keep >= 2 steps on the "parallel" bag axis.
            tb = min(tb, (B + 1) // 2)
        if 8 < tb < B:
            tb = (tb // 8) * 8                        # sublane-aligned partial out blocks
    else:
        tb = 1                                        # huge bags: tile the instance axis
        tn = budget_rows
    return tb, tn


def _mean_mil_head_kernel(x_ref, w1_ref, b1_ref, o_ref, *,
                          n_total, mask_tail, compute_dtype, act):
    # x_ref:  (TB, TN, D_feat)   TB bags x TN instances of the current tile
    # w1_ref: (D_feat, D_inner)
    # b1_ref: (1, D_inner)       float32
    # o_ref:  (TB, D_inner)      float32 accumulator, resident across the instance axis
    nt = pl.program_id(1)

    @pl.when(nt == 0)
    def _init():
        o_ref[...] = jnp.zeros_like(o_ref)

    tb, tn, d_feat = x_ref.shape
    d_inner = w1_ref.shape[1]

    # Layer 1: Linear + activation.  Flatten bags*instances onto the MXU M axis.
    # Matmul operands are cast here (in-kernel, hidden under the x DMA); accumulation
    # and all post-matmul elementwise work stay f32.
    mm_dtype = jnp.float32 if compute_dtype is None else compute_dtype
    x = x_ref[...].reshape(tb * tn, d_feat).astype(mm_dtype)
    w1 = w1_ref[...].astype(mm_dtype)
    h = jnp.dot(x, w1, preferred_element_type=jnp.float32)
    h = h + b1_ref[...]
    if act == "relu":
        h = jnp.maximum(h, 0.0)
    else:  # 'gelu'
        h = jax.nn.gelu(h)

    # Dropout(0.25): identity at inference.

    h = h.reshape(tb, tn, d_inner)
    if mask_tail:
        # Last instance tile may run past N; zero padded rows so they do not
        # contaminate the per-bag sum.  (Runs every step, but it is free VPU
        # filler under the HBM-bound x stream.)
        row = nt * tn + lax.broadcasted_iota(jnp.int32, (1, tn, 1), 1)
        h = jnp.where(row < n_total, h, 0.0)

    # Per-bag partial sum over this tile's instances (XLU sublane reduce),
    # written to a sublane-dense (TB, D_inner) block (unmasked stores).
    o_ref[...] += jnp.sum(h, axis=1)

    @pl.when(nt == pl.num_programs(1) - 1)
    def _finalize():
        o_ref[...] *= jnp.float32(1.0 / n_total)


def mean_mil_forward(x, w1, b1, w2, b2, *, compute_dtype=None, act="relu", tiles=None):
    """x: (B, N, D_feat) -> (B, n_class).  Weights stored as (in, out)."""
    B, N, D_feat = x.shape
    D_inner = w1.shape[1]

    x_block_budget, vmem_limit = _vmem_plan()
    if tiles is not None:
        TB, TN = tiles
    else:
        TB, TN = _choose_tiles(B, N, D_feat, jnp.dtype(x.dtype).itemsize, x_block_budget)
    grid = (pl.cdiv(B, TB), pl.cdiv(N, TN))

    kernel = partial(_mean_mil_head_kernel, n_total=N, mask_tail=(N % TN != 0),
                     compute_dtype=compute_dtype, act=act)

    h_mean = pl.pallas_call(
        kernel,
        out_shape=jax.ShapeDtypeStruct((B, D_inner), jnp.float32),
        grid_spec=pltpu.PrefetchScalarGridSpec(
            num_scalar_prefetch=0,
            grid=grid,
            in_specs=[
                pl.BlockSpec((TB, TN, D_feat), lambda b, n: (b, n, 0)),
                pl.BlockSpec((D_feat, D_inner), lambda b, n: (0, 0)),
                pl.BlockSpec((1, D_inner), lambda b, n: (0, 0)),
            ],
            out_specs=pl.BlockSpec((TB, D_inner), lambda b, n: (b, 0)),
        ),
        compiler_params=pltpu.CompilerParams(
            dimension_semantics=("parallel", "arbitrary"),
            vmem_limit_bytes=vmem_limit,
        ),
    )(x, w1, b1.reshape(1, D_inner).astype(jnp.float32))

    # Layer 2 (affine) commutes with the mean over instances, so apply it to the
    # per-bag mean hidden state: tiny (B, D_inner) @ (D_inner, n_class) in plain XLA.
    logits = h_mean @ w2.astype(jnp.float32) + b2.astype(jnp.float32).reshape(1, -1)
    return logits


def init_params(key, d_feat, d_inner, n_class):
    """Xavier-normal weights, zero biases (matches initialize_weights)."""
    k1, k2 = jax.random.split(key)
    std1 = (2.0 / (d_feat + d_inner)) ** 0.5
    std2 = (2.0 / (d_inner + n_class)) ** 0.5
    # Stored as (in_features, out_features).
    w1 = std1 * jax.random.normal(k1, (d_feat, d_inner), dtype=jnp.float32)
    b1 = jnp.zeros((1, d_inner), dtype=jnp.float32)
    w2 = std2 * jax.random.normal(k2, (d_inner, n_class), dtype=jnp.float32)
    b2 = jnp.zeros((1, n_class), dtype=jnp.float32)
    return w1, b1, w2, b2


if __name__ == "__main__":
    # conf.D_feat=32, conf.D_inner=32, conf.n_class=4.
    D_feat, D_inner, n_class = 32, 32, 4

    key = jax.random.PRNGKey(0)
    kx1, kx2, kp = jax.random.split(key, 3)
    w1, b1, w2, b2 = init_params(kp, D_feat, D_inner, n_class)

    def ref_forward(xv):
        return jnp.mean(jnp.maximum(xv @ w1 + b1, 0.0) @ w2 + b2, axis=1)

    # 1) Natural tile plan (B=2 bags, N=8 instances) — single full-block grid step.
    x1 = jax.random.normal(kx1, (2, 8, D_feat), dtype=jnp.float32)
    out1 = jax.block_until_ready(mean_mil_forward(x1, w1, b1, w2, b2))
    assert out1.shape == (2, n_class)
    assert jnp.allclose(out1, ref_forward(x1), atol=1e-5, rtol=1e-5)

    # 2) Forced small tiles: non-divisible B and N, multi-step accumulation over the
    #    instance axis, partial bag tile and masked instance tail.
    x2 = jax.random.normal(kx2, (10, 20, D_feat), dtype=jnp.float32)
    out2 = jax.block_until_ready(mean_mil_forward(x2, w1, b1, w2, b2, tiles=(8, 8)))
    assert out2.shape == (10, n_class)
    assert jnp.allclose(out2, ref_forward(x2), atol=1e-5, rtol=1e-5)

    # 3) bf16 matmul-operand path (cast happens inside the kernel) — loose sanity check.
    out3 = jax.block_until_ready(
        mean_mil_forward(x1, w1, b1, w2, b2, compute_dtype=jnp.bfloat16))
    assert out3.shape == (2, n_class)
    assert jnp.allclose(out3, ref_forward(x1), atol=2e-1, rtol=2e-1)

    print("KERNEL_OK")
</pallas_src>

<mosaic_0001>
module attributes {stable_mosaic.version = 11 : i64} {
  func.func @_mean_mil_head_kernel(%arg0: i32, %arg1: i32, %arg2: memref<2x8x32xf32, #tpu.memory_space<vmem>>, %arg3: memref<32x32xf32, #tpu.memory_space<vmem>>, %arg4: memref<1x32xf32, #tpu.memory_space<vmem>>, %arg5: memref<2x32xf32, #tpu.memory_space<vmem>>) attributes {dimension_semantics = [#tpu.dimension_semantics<parallel>, #tpu.dimension_semantics<arbitrary>], iteration_bounds = array<i64: 1, 1>, scalar_prefetch = 0 : i64, scratch_operands = 0 : i64, tpu.core_type = #tpu.core_type<tc>, window_params = [{transform_indices = @transform_0, window_bounds = array<i64: 2, 8, 32>}, {pipeline_mode = #tpu.pipeline_mode<synchronous>, transform_indices = @transform_1, window_bounds = array<i64: 32, 32>}, {pipeline_mode = #tpu.pipeline_mode<synchronous>, transform_indices = @transform_2, window_bounds = array<i64: 1, 32>}, {transform_indices = @transform_3, window_bounds = array<i64: 2, 32>}]} {
    %c0_i32 = arith.constant 0 : i32
    %0 = arith.cmpi eq, %arg1, %c0_i32 : i32
    %1 = arith.extui %0 : i1 to i32
    %c0_i32_0 = arith.constant 0 : i32
    %2 = arith.cmpi ne, %1, %c0_i32_0 : i32
    scf.if %2 {
      %cst_15 = arith.constant 0.000000e+00 : f32
      %20 = vector.broadcast %cst_15 : f32 to vector<2x32xf32>
      %c0_16 = arith.constant 0 : index
      %c0_17 = arith.constant 0 : index
      %21 = vector.load %arg5[%c0_16, %c0_17] : memref<2x32xf32, #tpu.memory_space<vmem>>, vector<2x32xf32>
      tpu.vector_store %arg5[%c0_16, %c0_17], %20 {strides = array<i32>} : memref<2x32xf32, #tpu.memory_space<vmem>>, vector<2x32xf32>,
    } else {
    }
    %c0 = arith.constant 0 : index
    %c0_1 = arith.constant 0 : index
    %c0_2 = arith.constant 0 : index
    %3 = vector.load %arg2[%c0, %c0_1, %c0_2] : memref<2x8x32xf32, #tpu.memory_space<vmem>>, vector<2x8x32xf32>
    %4 = vector.shape_cast %3 : vector<2x8x32xf32> to vector<16x32xf32>
    %c0_3 = arith.constant 0 : index
    %c0_4 = arith.constant 0 : index
    %5 = vector.load %arg3[%c0_3, %c0_4] : memref<32x32xf32, #tpu.memory_space<vmem>>, vector<32x32xf32>
    %cst = arith.constant dense<0.000000e+00> : vector<16x32xf32>
    %6 = tpu.matmul %4, %5, %cst {dimension_numbers = #tpu.dot_dimension_numbers<[1], [0], [0], [1], [0, 0, 1, 1], [], []>} : vector<16x32xf32>, vector<32x32xf32>, vector<16x32xf32> -> vector<16x32xf32>
    %c0_5 = arith.constant 0 : index
    %c0_6 = arith.constant 0 : index
    %7 = vector.load %arg4[%c0_5, %c0_6] : memref<1x32xf32, #tpu.memory_space<vmem>>, vector<1x32xf32>
    %8 = vector.broadcast %7 : vector<1x32xf32> to vector<16x32xf32>
    %9 = arith.addf %6, %8 : vector<16x32xf32>
    %cst_7 = arith.constant 0.000000e+00 : f32
    %10 = vector.broadcast %cst_7 : f32 to vector<16x32xf32>
    %11 = arith.maximumf %9, %10 : vector<16x32xf32>
    %12 = vector.shape_cast %11 : vector<16x32xf32> to vector<2x8x32xf32>
    %c0_8 = arith.constant 0 : index
    %c0_9 = arith.constant 0 : index
    %13 = vector.load %arg5[%c0_8, %c0_9] : memref<2x32xf32, #tpu.memory_space<vmem>>, vector<2x32xf32>
    %cst_10 = arith.constant dense<0.000000e+00> : vector<2x32xf32>
    %14 = vector.multi_reduction <add>, %12, %cst_10 [1] : vector<2x8x32xf32> to vector<2x32xf32>
    %15 = arith.addf %13, %14 : vector<2x32xf32>
    %c0_11 = arith.constant 0 : index
    %c0_12 = arith.constant 0 : index
    %16 = vector.load %arg5[%c0_11, %c0_12] : memref<2x32xf32, #tpu.memory_space<vmem>>, vector<2x32xf32>
    tpu.vector_store %arg5[%c0_11, %c0_12], %15 {strides = array<i32>} : memref<2x32xf32, #tpu.memory_space<vmem>>, vector<2x32xf32>,
    %c0_i32_13 = arith.constant 0 : i32
    %17 = arith.cmpi eq, %arg1, %c0_i32_13 : i32
    %18 = arith.extui %17 : i1 to i32
    %c0_i32_14 = arith.constant 0 : i32
    %19 = arith.cmpi ne, %18, %c0_i32_14 : i32
    scf.if %19 {
      %c0_15 = arith.constant 0 : index
      %c0_16 = arith.constant 0 : index
      %20 = vector.load %arg5[%c0_15, %c0_16] : memref<2x32xf32, #tpu.memory_space<vmem>>, vector<2x32xf32>
      %cst_17 = arith.constant 1.250000e-01 : f32
      %21 = vector.broadcast %cst_17 : f32 to vector<2x32xf32>
      %22 = arith.mulf %20, %21 : vector<2x32xf32>
      %c0_18 = arith.constant 0 : index
      %c0_19 = arith.constant 0 : index
      %23 = vector.load %arg5[%c0_18, %c0_19] : memref<2x32xf32, #tpu.memory_space<vmem>>, vector<2x32xf32>
      tpu.vector_store %arg5[%c0_18, %c0_19], %22 {strides = array<i32>} : memref<2x32xf32, #tpu.memory_space<vmem>>, vector<2x32xf32>,
    } else {
    }
    return
  }
  func.func @transform_0(%arg0: i32, %arg1: i32) -> (i32, i32, i32) {
    %c0_i32 = arith.constant 0 : i32
    %c0_i32_0 = arith.constant 0 : i32
    return %arg0, %arg1, %c0_i32 : i32, i32, i32
  }
  func.func @transform_1(%arg0: i32, %arg1: i32) -> (i32, i32) {
    %c0_i32 = arith.constant 0 : i32
    %c0_i32_0 = arith.constant 0 : i32
    %c0_i32_1 = arith.constant 0 : i32
    return %c0_i32, %c0_i32_0 : i32, i32
  }
  func.func @transform_2(%arg0: i32, %arg1: i32) -> (i32, i32) {
    %c0_i32 = arith.constant 0 : i32
    %c0_i32_0 = arith.constant 0 : i32
    %c0_i32_1 = arith.constant 0 : i32
    return %c0_i32, %c0_i32_0 : i32, i32
  }
  func.func @transform_3(%arg0: i32, %arg1: i32) -> (i32, i32) {
    %c0_i32 = arith.constant 0 : i32
    %c0_i32_0 = arith.constant 0 : i32
    return %arg0, %c0_i32 : i32, i32
  }
}

</mosaic_0001>

<llo_original>
// kernel: tpu_custom_call.1
$region0: #{tpu_custom_call.1}
  #allocation0 [shape = 'u32[]', space=smem, size = 0x4, offset = 0x4, fixed_abs, tag = 'smem constant byte address 0x4 - core index']
  #allocation1 [shape = 'u32[144,128]{1,0:T(1,128)}', space=vmem, size = 0x12000, scoped, tag = 'internal scratch']
  %s0 = inlined_call_operand.hbm [shape: f32[2,8,32], index: 0, kind: input, shape index: {}]
  %s1 = inlined_call_operand.hbm [shape: f32[32,32], index: 1, kind: input, shape index: {}]
  %s2 = inlined_call_operand.vmem [shape: f32[1,32], index: 2, kind: input, shape index: {}]
  %s3 = inlined_call_operand.hbm [shape: f32[2,32], index: 3, kind: output, shape index: {}]
  %s4 = sld [smem:[#allocation0]]
  $region38: #{tpu_custom_call.1} parent=0
    _
  %s6 = ssub.s32 1, %s4
  %s7 = scalar_select 0, %s6, %s4
  $region1: #{tpu_custom_call.1} parent=0
    #allocation2 [shape = 'u8[8192]{0}', space=vmem, size = 0x2000, scoped, tag = 'input window, operand 0, single buffered']
    #allocation3 [shape = 's32[1]{0}', space=sflag, size = 0x4, scoped, tag = 'scoped memory for tpu_custom_call.1']
    #allocation4 [shape = 's32[1]{0}', space=sflag, size = 0x4, scoped, tag = 'scoped memory for tpu_custom_call.1']
    #allocation5 [shape = 'u8[16384]{0}', space=vmem, size = 0x4000, scoped, tag = 'input window, operand 1, single buffered']
    #allocation6 [shape = 's32[1]{0}', space=sflag, size = 0x4, scoped, tag = 'scoped memory for tpu_custom_call.1']
    #allocation7 [shape = 'u8[1024]{0}', space=vmem, size = 0x400, scoped, tag = 'output window, operand 0, single buffered']
    %8 = vsyncpa [#allocation3], 0
    %9 = vsyncpa [#allocation6], 0
    %10 = vsyncpa [#allocation4], 0
    // Predicated region
    $region2: #{tpu_custom_call.1} parent=1 // pred_check
      _
    $region3: #{tpu_custom_call.1} parent=1 // pred_check_branch
      %12 = sbr.rel (0) target = $region5
    $region4: #{tpu_custom_call.1} parent=1 // pred_region
      %s14 = ssub.s32 256, 256
      %15 = vsyncadd [#allocation3], %s14
      %s16 = sshll.u32 [#allocation2], 4
      %s17 = int_to_ptr.vmem [resolvable:$true] %s16
      %22 = dma.hbm_to_vmem [thread:$0]  %s0, 256, %s17, [#allocation3], 128, 128, 8
    $region5: #{tpu_custom_call.1} parent=1 // pred_fallthru
      _
    // Predicated region
    $region6: #{tpu_custom_call.1} parent=1 // pred_check
      _
    $region7: #{tpu_custom_call.1} parent=1 // pred_check_branch
      %24 = sbr.rel (0) target = $region9
    $region8: #{tpu_custom_call.1} parent=1 // pred_region
      %s26 = ssub.s32 512, 512
      %27 = vsyncadd [#allocation6], %s26
      %s28 = sshll.u32 [#allocation5], 4
      %s29 = int_to_ptr.vmem [resolvable:$true] %s28
      %34 = dma.hbm_to_vmem [thread:$0]  %s1, 512, %s29, [#allocation6], 128, 128, 8
    $region9: #{tpu_custom_call.1} parent=1 // pred_fallthru
      _
    // Predicated region
    $region10: #{tpu_custom_call.1} parent=1 // pred_check
      _
    $region11: #{tpu_custom_call.1} parent=1 // pred_check_branch
      %36 = sbr.rel (0) target = $region13
    $region12: #{tpu_custom_call.1} parent=1 // pred_region
      _
    $region13: #{tpu_custom_call.1} parent=1 // pred_fallthru
      _
    // Predicated region
    $region14: #{tpu_custom_call.1} parent=1 // pred_check
      _
    $region15: #{tpu_custom_call.1} parent=1 // pred_check_branch
      %38 = sbr.rel (0) target = $region17
    $region16: #{tpu_custom_call.1} parent=1 // pred_region
      %39 = dma.done [#allocation3], 256
    $region17: #{tpu_custom_call.1} parent=1 // pred_fallthru
      _
    // Predicated region
    $region18: #{tpu_custom_call.1} parent=1 // pred_check
      _
    $region19: #{tpu_custom_call.1} parent=1 // pred_check_branch
      %41 = sbr.rel (0) target = $region21
    $region20: #{tpu_custom_call.1} parent=1 // pred_region
      %42 = dma.done [#allocation6], 512
    $region21: #{tpu_custom_call.1} parent=1 // pred_fallthru
      _
    %p43 = scmp.eq.s32.totalorder 0, 0
    // Predicated region
    $region22: #{tpu_custom_call.1} parent=1 // pred_check
      %p44 = pneg %p43
    $region23: #{tpu_custom_call.1} parent=1 // pred_check_branch
      %46 = sbr.rel (%p44) target = $region25
    $region24: #{tpu_custom_call.1} parent=1 // pred_region
      %vm47 = vcmask 254976
      %48 = vst.msk [vmem:[#allocation7] sm:$0x3] %vm47, 0.0
    $region25: #{tpu_custom_call.1} parent=1 // pred_fallthru
      _
    %v49 = vld [vmem:[#allocation2] sm:$0xff]
    %v50 = vld [vmem:[#allocation2 + $0x8] sm:$0xff]
    %v51 = vld [vmem:[#allocation5] sm:$0xff]
    %v52 = vld [vmem:[#allocation5 + $0x8] sm:$0xff]
    %v53 = vld [vmem:[#allocation5 + $0x10] sm:$0xff]
    %v54 = vld [vmem:[#allocation5 + $0x18] sm:$0xff]
    %v55 = vld [vmem:[%s2] sm:$0x1]
    %v57 = vlaneseq
    %v58 = vshrl.u32 %v57, 7
    %v59 = vsub.s32 0, %v58
    %v60 = vrot.slane %v55, %v59
    %vm62 = vcmask 261120
    %v64 = vsel %vm62, %v49, 0
    %v67 = vsel %vm62, %v50, 0
    %69 = vmatprep.subr.mxu0 0.0
    %70 = vmatpush1.msra.mxu0 %v51
    %71 = vmatprep.subr.mxu0 0.0
    %72 = vmatpush1.msra.mxu0 %v52
    %73 = vmatprep.subr.mxu0 0.0
    %74 = vmatpush1.msra.mxu0 %v53
    %75 = vmatprep.subr.mxu0 0.0
    %76 = vmatpush1.msra.mxu0 %v54
    %77 = vmatprep.subr.mxu0 0.0
    %78 = vmatpush1.msra.mxu0 0.0
    %79 = vmatprep.subr.mxu0 0.0
    %80 = vmatpush1.msra.mxu0 0.0
    %81 = vmatprep.subr.mxu0 0.0
    %82 = vmatpush1.msra.mxu0 0.0
    %83 = vmatprep.subr.mxu0 0.0
    %84 = vmatpush1.msra.mxu0 0.0
    %85 = vmatprep.subr.mxu0 0.0
    %86 = vmatpush1.msra.mxu0 0.0
    %87 = vmatprep.subr.mxu0 0.0
    %88 = vmatpush1.msra.mxu0 0.0
    %89 = vmatprep.subr.mxu0 0.0
    %90 = vmatpush1.msra.mxu0 0.0
    %91 = vmatprep.subr.mxu0 0.0
    %92 = vmatpush1.msra.mxu0 0.0
    %93 = vmatprep.subr.mxu0 0.0
    %94 = vmatpush1.msra.mxu0 0.0
    %95 = vmatprep.subr.mxu0 0.0
    %96 = vmatpush1.msra.mxu0 0.0
    %97 = vmatprep.subr.mxu0 0.0
    %98 = vmatpush1.msra.mxu0 0.0
    %99 = vmatprep.subr.mxu0 0.0
    %100 = vmatpush1.msra.mxu0 0.0
    %101 = vmatprep.subr.mxu0 0.0
    %102 = vmatpush1.msra.mxu0 0.0
    %103 = vmatprep.subr.mxu0 0.0
    %104 = vmatpush1.msra.mxu0 0.0
    %105 = vmatprep.subr.mxu0 0.0
    %106 = vmatpush1.msra.mxu0 0.0
    %107 = vmatprep.subr.mxu0 0.0
    %108 = vmatpush1.msra.mxu0 0.0
    %109 = vmatprep.subr.mxu0 0.0
    %110 = vmatpush1.msra.mxu0 0.0
    %111 = vmatprep.subr.mxu0 0.0
    %112 = vmatpush1.msra.mxu0 0.0
    %113 = vmatprep.subr.mxu0 0.0
    %114 = vmatpush1.msra.mxu0 0.0
    %115 = vmatprep.subr.mxu0 0.0
    %116 = vmatpush1.msra.mxu0 0.0
    %117 = vmatprep.subr.mxu0 0.0
    %118 = vmatpush1.msra.mxu0 0.0
    %119 = vmatprep.subr.mxu0 0.0
    %120 = vmatpush1.msra.mxu0 0.0
    %121 = vmatprep.subr.mxu0 0.0
    %122 = vmatpush1.msra.mxu0 0.0
    %123 = vmatprep.subr.mxu0 0.0
    %124 = vmatpush1.msra.mxu0 0.0
    %125 = vmatprep.subr.mxu0 0.0
    %126 = vmatpush1.msra.mxu0 0.0
    %127 = vmatprep.subr.mxu0 0.0
    %128 = vmatpush1.msra.mxu0 0.0
    %129 = vmatprep.subr.mxu0 0.0
    %130 = vmatpush1.msra.mxu0 0.0
    %131 = vmatprep.subr.mxu0 0.0
    %132 = vmatpush1.msra.mxu0 0.0
    %133 = vmatprep.mubr.f32.mxu0 0.0
    %134 = vmatmul.mubr.f32.gmra.mrb[0].mxu0 %v64
    %v135 = vpop.f32.mrb[0].mxu0
    %v136 = vadd.f32 %v60, %v135
    %v137 = vpop.f32.mrb[0].mxu0
    %138 = vmatprep.mubr.f32.mxu0 0.0
    %139 = vmatmul.mubr.f32.gmra.mrb[0].mxu0 %v67
    %v140 = vpop.f32.mrb[0].mxu0
    %v141 = vadd.f32 %v60, %v140
    %v142 = vpop.f32.mrb[0].mxu0
    %143 = vdwg.mxu0
    %v144 = vmax.f32 %v136, 0.0
    %v145 = vmax.f32 %v141, 0.0
    %v146 = vld [vmem:[#allocation7] sm:$0x3]
    %v147 = vsel %vm62, %v144, 0.0
    %v148 = vrot.slane %v147, 4
    %v149 = vadd.f32 %v147, %v148
    %v150 = vrot.slane %v149, 2
    %v151 = vadd.f32 %v149, %v150
    %v152 = vrot.slane %v151, 1
    %v153 = vadd.f32 %v151, %v152
    %v154 = vsel %vm62, %v145, 0.0
    %v155 = vrot.slane %v154, 4
    %v156 = vadd.f32 %v154, %v155
    %v157 = vrot.slane %v156, 2
    %v158 = vadd.f32 %v156, %v157
    %v159 = vrot.slane %v158, 1
    %v160 = vadd.f32 %v158, %v159
    %vm163 = vcmask 1041409
    %v164 = vsel %vm163, %v160, %v153
    %v166 = vadd.f32 %v146, %v164
    %vm167 = vcmask 254976
    %168 = vst.msk [vmem:[#allocation7] sm:$0x3] %vm167, %v166
    // Predicated region
    $region26: #{tpu_custom_call.1} parent=1 // pred_check
      %p169 = pneg %p43
    $region27: #{tpu_custom_call.1} parent=1 // pred_check_branch
      %171 = sbr.rel (%p169) target = $region29
    $region28: #{tpu_custom_call.1} parent=1 // pred_region
      %v172 = vld [vmem:[#allocation7] sm:$0x3]
      %v173 = vmul.f32 %v172, 0.125
      %174 = vst.msk [vmem:[#allocation7] sm:$0x3] %vm167, %v173
    $region29: #{tpu_custom_call.1} parent=1 // pred_fallthru
      _
    // Predicated region
    $region30: #{tpu_custom_call.1} parent=1 // pred_check
      _
    $region31: #{tpu_custom_call.1} parent=1 // pred_check_branch
      %176 = sbr.rel (0) target = $region33
    $region32: #{tpu_custom_call.1} parent=1 // pred_region
      %s178 = ssub.s32 32, 32
      %179 = vsyncadd [#allocation4], %s178
      %s181 = sshll.u32 [#allocation7], 4
      %s182 = int_to_ptr.vmem [resolvable:$true] %s181
      %184 = dma.vmem_to_hbm [thread:$0]  %s182, 32, %s3, [#allocation4]
    $region33: #{tpu_custom_call.1} parent=1 // pred_fallthru
      _
    // Predicated region
    $region34: #{tpu_custom_call.1} parent=1 // pred_check
      _
    $region35: #{tpu_custom_call.1} parent=1 // pred_check_branch
      %186 = sbr.rel (0) target = $region37
    $region36: #{tpu_custom_call.1} parent=1 // pred_region
      %187 = dma.done [#allocation4], 32
    $region37: #{tpu_custom_call.1} parent=1 // pred_fallthru
      _
    %188 = vsyncpa [#allocation3], 1
    %189 = vsyncpa [#allocation6], 1
    %190 = vsyncpa [#allocation4], 1

</llo_original>
